<compile_context>
chip_gen: v7x
topology: tpu7x:2x2x1
jax: 0.10.0
libtpu: 0.0.40
codegen_flags: <defaults>
</compile_context>

<pallas_src>
import math

import jax
import jax.numpy as jnp
from jax import lax
from jax.experimental import pallas as pl
from jax.experimental.pallas import tpu as pltpu

RMS_EPS = 1e-5
BF16 = jnp.bfloat16
F32 = jnp.float32


# --------------------------------------------------------------------------
# helpers
# --------------------------------------------------------------------------
def _rmsnorm(x, w):
    # x: (..., D) f32, w: (1, D) f32  -- statistics kept in f32
    ms = jnp.mean(x * x, axis=-1, keepdims=True)
    return x * lax.rsqrt(ms + RMS_EPS) * w


def _pick_tile(n, max_tile, align):
    """Largest divisor of n that is <= max_tile and a multiple of `align`.
    Falls back to n (the full dim is always a legal block)."""
    if n <= max_tile:
        return n
    for t in range(max_tile, 0, -1):
        if n % t == 0 and t % align == 0:
            return t
    return n


def _cp(semantics):
    return pltpu.CompilerParams(dimension_semantics=semantics,
                                vmem_limit_bytes=48 * 1024 * 1024)


def _split_heads(x, num_heads):          # (B, T, D) -> (B*H, T, dh)
    B, T, D = x.shape
    dh = D // num_heads
    return x.reshape(B, T, num_heads, dh).transpose(0, 2, 1, 3).reshape(
        B * num_heads, T, dh)


def _merge_heads(x, batch, num_heads):   # (B*H, T, dh) -> (B, T, D)
    _, T, dh = x.shape
    return x.reshape(batch, num_heads, T, dh).transpose(0, 2, 1, 3).reshape(
        batch, T, num_heads * dh)


# --------------------------------------------------------------------------
# kernels
# --------------------------------------------------------------------------
def qkv_kernel(x_ref, ln1_ref, wq_ref, wk_ref, wv_ref, q_ref, k_ref, v_ref):
    # x: (1, tq, D) f32, weights: (D, D) bf16 (pre-transposed, scale folded in Wq)
    xn = _rmsnorm(x_ref[0], ln1_ref[...]).astype(BF16)
    q_ref[0] = jnp.dot(xn, wq_ref[...], preferred_element_type=F32).astype(BF16)
    k_ref[0] = jnp.dot(xn, wk_ref[...], preferred_element_type=F32).astype(BF16)
    v_ref[0] = jnp.dot(xn, wv_ref[...], preferred_element_type=F32).astype(BF16)


def flash_attn_kernel(q_ref, k_ref, v_ref, o_ref, m_sc, l_sc, acc_sc):
    # q: (1, tq, dh) bf16, k/v: (1, tk, dh) bf16 ; online softmax over KV tiles
    tq = q_ref.shape[1]
    tk = k_ref.shape[1]
    qi = pl.program_id(1)
    ki = pl.program_id(2)

    @pl.when(ki == 0)
    def _():
        m_sc[...] = jnp.full(m_sc.shape, -jnp.inf, m_sc.dtype)
        l_sc[...] = jnp.zeros(l_sc.shape, l_sc.dtype)
        acc_sc[...] = jnp.zeros(acc_sc.shape, acc_sc.dtype)

    q_start = qi * tq
    k_start = ki * tk

    # Skip KV tiles that are entirely in the causal-masked future.
    @pl.when(k_start <= q_start + tq - 1)
    def _():
        s = jnp.einsum("bqd,bkd->bqk", q_ref[...], k_ref[...],
                       preferred_element_type=F32)          # (1, tq, tk) f32
        row = q_start + lax.broadcasted_iota(jnp.int32, s.shape, 1)
        col = k_start + lax.broadcasted_iota(jnp.int32, s.shape, 2)
        s = jnp.where(col <= row, s, -1e30)
        m_prev = m_sc[...]
        m_new = jnp.maximum(m_prev, s.max(axis=-1, keepdims=True))
        alpha = jnp.exp(m_prev - m_new)
        p = jnp.exp(s - m_new)
        l_sc[...] = alpha * l_sc[...] + p.sum(axis=-1, keepdims=True)
        acc_sc[...] = alpha * acc_sc[...] + jnp.einsum(
            "bqk,bkd->bqd", p.astype(v_ref.dtype), v_ref[...],
            preferred_element_type=F32)
        m_sc[...] = m_new

    @pl.when(ki == pl.num_programs(2) - 1)
    def _():
        o_ref[...] = (acc_sc[...] *
                      pl.reciprocal(l_sc[...], approx=True)).astype(o_ref.dtype)


def post_attn_kernel(attn_ref, x_ref, wo_ref, ln2_ref, w1_ref, w2_ref, o_ref,
                     h1_sc, xn2_sc, acc_sc):
    # attn: (1, tq, D) bf16, x: (1, tq, D) f32, wo: (D, D) bf16,
    # w1: (D, tf) bf16, w2: (tf, D) bf16 -- d_ff streamed as reduction axis.
    fi = pl.program_id(2)

    @pl.when(fi == 0)
    def _():
        proj = jnp.dot(attn_ref[0], wo_ref[...], preferred_element_type=F32)
        h1 = x_ref[0] + proj                       # residual (f32)
        h1_sc[...] = h1
        xn2_sc[...] = _rmsnorm(h1, ln2_ref[...]).astype(BF16)
        acc_sc[...] = jnp.zeros(acc_sc.shape, acc_sc.dtype)

    hdd = jnp.dot(xn2_sc[...], w1_ref[...], preferred_element_type=F32)
    # TODO(synk): exact erf-GELU replaced with tanh-approximate GELU (EUP-friendly).
    hdd = jax.nn.gelu(hdd, approximate=True).astype(BF16)
    acc_sc[...] += jnp.dot(hdd, w2_ref[...], preferred_element_type=F32)

    @pl.when(fi == pl.num_programs(2) - 1)
    def _():
        o_ref[0] = h1_sc[...] + acc_sc[...]


def head_kernel(x_ref, ln_ref, wlm_ref, o_ref):
    # x: (1, tq, D) f32, wlm: (D, tv) bf16 -> logits (1, tq, tv) f32
    xn = _rmsnorm(x_ref[0], ln_ref[...]).astype(BF16)
    o_ref[0] = jnp.dot(xn, wlm_ref[...], preferred_element_type=F32)


# --------------------------------------------------------------------------
# wrappers
# --------------------------------------------------------------------------
def run_block(x, layer, *, num_heads):
    B, T, D = x.shape
    H = num_heads
    dh = D // H
    d_ff = layer["w1_t"].shape[1]
    tq = _pick_tile(T, 256, 8)
    tk = _pick_tile(T, 256, 8)
    tf = _pick_tile(d_ff, 2048, 128)

    # ---- 1) RMSNorm + QKV projections --------------------------------------
    q, k, v = pl.pallas_call(
        qkv_kernel,
        out_shape=(jax.ShapeDtypeStruct((B, T, D), BF16),
                   jax.ShapeDtypeStruct((B, T, D), BF16),
                   jax.ShapeDtypeStruct((B, T, D), BF16)),
        grid=(B, T // tq),
        in_specs=[
            pl.BlockSpec((1, tq, D), lambda b, i: (b, i, 0)),
            pl.BlockSpec((1, D), lambda b, i: (0, 0)),
            pl.BlockSpec((D, D), lambda b, i: (0, 0)),
            pl.BlockSpec((D, D), lambda b, i: (0, 0)),
            pl.BlockSpec((D, D), lambda b, i: (0, 0)),
        ],
        out_specs=(pl.BlockSpec((1, tq, D), lambda b, i: (b, i, 0)),
                   pl.BlockSpec((1, tq, D), lambda b, i: (b, i, 0)),
                   pl.BlockSpec((1, tq, D), lambda b, i: (b, i, 0))),
        compiler_params=_cp(("parallel", "parallel")),
    )(x, layer["ln1"], layer["wq_t"], layer["wk_t"], layer["wv_t"])

    # per-head layout plumbing (plain-JAX reshape/transpose, outside kernels)
    qh = _split_heads(q, H)      # (B*H, T, dh) bf16
    kh = _split_heads(k, H)
    vh = _split_heads(v, H)

    # ---- 2) flash attention (online softmax over KV tiles) -----------------
    attn = pl.pallas_call(
        flash_attn_kernel,
        out_shape=jax.ShapeDtypeStruct((B * H, T, dh), BF16),
        grid=(B * H, T // tq, T // tk),
        in_specs=[
            pl.BlockSpec((1, tq, dh), lambda bh, qi, ki: (bh, qi, 0)),
            pl.BlockSpec((1, tk, dh), lambda bh, qi, ki: (bh, ki, 0)),
            pl.BlockSpec((1, tk, dh), lambda bh, qi, ki: (bh, ki, 0)),
        ],
        out_specs=pl.BlockSpec((1, tq, dh), lambda bh, qi, ki: (bh, qi, 0)),
        scratch_shapes=[
            pltpu.VMEM((1, tq, 1), F32),    # running max
            pltpu.VMEM((1, tq, 1), F32),    # running sum
            pltpu.VMEM((1, tq, dh), F32),   # running accumulator
        ],
        compiler_params=_cp(("parallel", "parallel", "arbitrary")),
    )(qh, kh, vh)

    attn = _merge_heads(attn, B, H)          # (B, T, D) bf16

    # ---- 3) output projection + residual + streamed FFN --------------------
    out = pl.pallas_call(
        post_attn_kernel,
        out_shape=jax.ShapeDtypeStruct((B, T, D), F32),
        grid=(B, T // tq, d_ff // tf),
        in_specs=[
            pl.BlockSpec((1, tq, D), lambda b, i, f: (b, i, 0)),   # attn
            pl.BlockSpec((1, tq, D), lambda b, i, f: (b, i, 0)),   # residual
            pl.BlockSpec((D, D), lambda b, i, f: (0, 0)),          # wo
            pl.BlockSpec((1, D), lambda b, i, f: (0, 0)),          # ln2
            pl.BlockSpec((D, tf), lambda b, i, f: (0, f)),         # w1 chunk
            pl.BlockSpec((tf, D), lambda b, i, f: (f, 0)),         # w2 chunk
        ],
        out_specs=pl.BlockSpec((1, tq, D), lambda b, i, f: (b, i, 0)),
        scratch_shapes=[
            pltpu.VMEM((tq, D), F32),    # h1 (post-attention residual)
            pltpu.VMEM((tq, D), BF16),   # rmsnorm(h1), MXU-ready
            pltpu.VMEM((tq, D), F32),    # FFN accumulator
        ],
        compiler_params=_cp(("parallel", "parallel", "arbitrary")),
    )(attn, x, layer["wo_t"], layer["ln2"], layer["w1_t"], layer["w2_t"])
    return out


def run_head(x, ln_final, wlm_t):
    B, T, D = x.shape
    V = wlm_t.shape[1]
    tq = _pick_tile(T, 256, 8)
    tv = _pick_tile(V, 2048, 128)
    return pl.pallas_call(
        head_kernel,
        out_shape=jax.ShapeDtypeStruct((B, T, V), F32),
        grid=(B, T // tq, V // tv),
        in_specs=[
            pl.BlockSpec((1, tq, D), lambda b, i, j: (b, i, 0)),
            pl.BlockSpec((1, D), lambda b, i, j: (0, 0)),
            pl.BlockSpec((D, tv), lambda b, i, j: (0, j)),
        ],
        out_specs=pl.BlockSpec((1, tq, tv), lambda b, i, j: (b, i, j)),
        compiler_params=_cp(("parallel", "parallel", "parallel")),
    )(x, ln_final, wlm_t)


# --------------------------------------------------------------------------
# params (PyTorch nn.Linear convention), preparation, and forward
# --------------------------------------------------------------------------
def init_params(key, vocab_size, context_length, d_model, num_layers, d_ff):
    keys = jax.random.split(key, 3 + 8 * num_layers)
    ki = iter(keys)
    std = 0.02
    params = {
        "tok_emb": jax.random.normal(next(ki), (vocab_size, d_model), F32) * std,
        "pos_emb": jax.random.normal(next(ki), (context_length, d_model), F32) * std,
        "layers": [],
        "ln_final": jnp.ones((1, d_model), F32),
        "lm_head": jax.random.normal(next(ki), (vocab_size, d_model), F32) * std,
    }
    for _ in range(num_layers):
        params["layers"].append({
            "ln1": jnp.ones((1, d_model), F32),
            "wq": jax.random.normal(next(ki), (d_model, d_model), F32) * std,
            "wk": jax.random.normal(next(ki), (d_model, d_model), F32) * std,
            "wv": jax.random.normal(next(ki), (d_model, d_model), F32) * std,
            "wo": jax.random.normal(next(ki), (d_model, d_model), F32) * std,
            "ln2": jnp.ones((1, d_model), F32),
            "w1": jax.random.normal(next(ki), (d_ff, d_model), F32) * std,
            "w2": jax.random.normal(next(ki), (d_model, d_ff), F32) * std,
        })
    return params


def prepare_params(params, num_heads):
    """Pre-transpose weights to (in, out), fold attention scale into Wq, cast to bf16."""
    d_model = params["tok_emb"].shape[1]
    scale = 1.0 / math.sqrt(d_model // num_heads)
    prepped = {
        "tok_emb": params["tok_emb"],
        "pos_emb": params["pos_emb"],
        "ln_final": params["ln_final"],
        "lm_head_t": params["lm_head"].T.astype(BF16),         # (D, V)
        "layers": [],
    }
    for layer in params["layers"]:
        prepped["layers"].append({
            "ln1": layer["ln1"],
            "ln2": layer["ln2"],
            "wq_t": (layer["wq"].T * scale).astype(BF16),      # (D, D)
            "wk_t": layer["wk"].T.astype(BF16),
            "wv_t": layer["wv"].T.astype(BF16),
            "wo_t": layer["wo"].T.astype(BF16),
            "w1_t": layer["w1"].T.astype(BF16),                # (D, d_ff)
            "w2_t": layer["w2"].T.astype(BF16),                # (d_ff, D)
        })
    return prepped


def transformer_forward(params, token_ids, *, num_heads):
    B, T = token_ids.shape
    prepped = prepare_params(params, num_heads)
    # embedding gather + position add: plain-JAX glue
    h = jnp.take(prepped["tok_emb"], token_ids, axis=0) + prepped["pos_emb"][:T][None]
    # TODO(synk): dropout (attn_pdrop / residual_pdrop) omitted -- identity for pdrop=0.0
    for layer in prepped["layers"]:
        h = run_block(h, layer, num_heads=num_heads)
    return run_head(h, prepped["ln_final"], prepped["lm_head_t"])


# --------------------------------------------------------------------------
# pure-JAX reference (f32) for a sanity check
# --------------------------------------------------------------------------
def transformer_reference(params, token_ids, *, num_heads):
    B, T = token_ids.shape
    D = params["tok_emb"].shape[1]
    H = num_heads
    dh = D // H
    x = jnp.take(params["tok_emb"], token_ids, axis=0) + params["pos_emb"][:T][None]
    mask = jnp.tril(jnp.ones((T, T), bool))
    for layer in params["layers"]:
        xn = _rmsnorm(x, layer["ln1"])
        q = (xn @ layer["wq"].T).reshape(B, T, H, dh).transpose(0, 2, 1, 3)
        k = (xn @ layer["wk"].T).reshape(B, T, H, dh).transpose(0, 2, 1, 3)
        v = (xn @ layer["wv"].T).reshape(B, T, H, dh).transpose(0, 2, 1, 3)
        s = jnp.einsum("bhqd,bhkd->bhqk", q, k) / math.sqrt(dh)
        s = jnp.where(mask, s, -1e30)
        p = jax.nn.softmax(s, axis=-1)
        a = jnp.einsum("bhqk,bhkd->bhqd", p, v).transpose(0, 2, 1, 3).reshape(B, T, D)
        x = x + a @ layer["wo"].T
        xn2 = _rmsnorm(x, layer["ln2"])
        hdd = jax.nn.gelu(xn2 @ layer["w1"].T, approximate=True)
        x = x + hdd @ layer["w2"].T
    return _rmsnorm(x, params["ln_final"]) @ params["lm_head"].T


# --------------------------------------------------------------------------
if __name__ == "__main__":
    vocab_size = 64
    context_length = 16
    d_model = 32
    num_layers = 2
    num_heads = 4
    d_ff = 64
    B, T = 2, 8

    key = jax.random.PRNGKey(0)
    k_param, k_tok = jax.random.split(key)
    params = init_params(k_param, vocab_size, context_length, d_model, num_layers, d_ff)
    token_ids = jax.random.randint(k_tok, (B, T), 0, vocab_size, dtype=jnp.int32)

    logits = transformer_forward(params, token_ids, num_heads=num_heads)
    jax.block_until_ready(logits)
    assert logits.shape == (B, T, vocab_size)
    assert bool(jnp.all(jnp.isfinite(logits)))

    ref = transformer_reference(params, token_ids, num_heads=num_heads)
    max_err = float(jnp.max(jnp.abs(logits - ref)))
    assert max_err < 5e-2, f"mismatch vs reference: max_err={max_err}"

    print("KERNEL_OK")
</pallas_src>

<mosaic_0001>
module attributes {stable_mosaic.version = 11 : i64} {
  func.func @qkv_kernel(%arg0: i32, %arg1: i32, %arg2: memref<1x8x32xf32, #tpu.memory_space<vmem>>, %arg3: memref<1x32xf32, #tpu.memory_space<vmem>>, %arg4: memref<32x32xbf16, #tpu.memory_space<vmem>>, %arg5: memref<32x32xbf16, #tpu.memory_space<vmem>>, %arg6: memref<32x32xbf16, #tpu.memory_space<vmem>>, %arg7: memref<1x8x32xbf16, #tpu.memory_space<vmem>>, %arg8: memref<1x8x32xbf16, #tpu.memory_space<vmem>>, %arg9: memref<1x8x32xbf16, #tpu.memory_space<vmem>>) attributes {dimension_semantics = [#tpu.dimension_semantics<parallel>, #tpu.dimension_semantics<parallel>], iteration_bounds = array<i64: 2, 1>, scalar_prefetch = 0 : i64, scratch_operands = 0 : i64, tpu.core_type = #tpu.core_type<tc>, window_params = [{transform_indices = @transform_0, window_bounds = array<i64: 1, 8, 32>}, {pipeline_mode = #tpu.pipeline_mode<synchronous>, transform_indices = @transform_1, window_bounds = array<i64: 1, 32>}, {pipeline_mode = #tpu.pipeline_mode<synchronous>, transform_indices = @transform_2, window_bounds = array<i64: 32, 32>}, {pipeline_mode = #tpu.pipeline_mode<synchronous>, transform_indices = @transform_3, window_bounds = array<i64: 32, 32>}, {pipeline_mode = #tpu.pipeline_mode<synchronous>, transform_indices = @transform_4, window_bounds = array<i64: 32, 32>}, {transform_indices = @transform_5, window_bounds = array<i64: 1, 8, 32>}, {transform_indices = @transform_6, window_bounds = array<i64: 1, 8, 32>}, {transform_indices = @transform_7, window_bounds = array<i64: 1, 8, 32>}]} {
    %c0 = arith.constant 0 : index
    %c0_0 = arith.constant 0 : index
    %c0_1 = arith.constant 0 : index
    %0 = vector.load %arg2[%c0, %c0_0, %c0_1] : memref<1x8x32xf32, #tpu.memory_space<vmem>>, vector<1x8x32xf32>
    %1 = vector.shape_cast %0 : vector<1x8x32xf32> to vector<8x32xf32>
    %c0_2 = arith.constant 0 : index
    %c0_3 = arith.constant 0 : index
    %2 = vector.load %arg3[%c0_2, %c0_3] : memref<1x32xf32, #tpu.memory_space<vmem>>, vector<1x32xf32>
    %3 = arith.mulf %1, %1 : vector<8x32xf32>
    %cst = arith.constant dense<0.000000e+00> : vector<8xf32>
    %4 = vector.multi_reduction <add>, %3, %cst [1] : vector<8x32xf32> to vector<8xf32>
    %5 = vector.shape_cast %4 : vector<8xf32> to vector<8x1xf32>
    %cst_4 = arith.constant 3.200000e+01 : f32
    %6 = vector.broadcast %cst_4 : f32 to vector<8x1xf32>
    %7 = arith.divf %5, %6 : vector<8x1xf32>
    %cst_5 = arith.constant 9.99999974E-6 : f32
    %8 = vector.broadcast %cst_5 : f32 to vector<8x1xf32>
    %9 = arith.addf %7, %8 : vector<8x1xf32>
    %10 = math.rsqrt %9 : vector<8x1xf32>
    %11 = vector.broadcast %10 : vector<8x1xf32> to vector<8x32xf32>
    %12 = arith.mulf %1, %11 : vector<8x32xf32>
    %13 = vector.broadcast %2 : vector<1x32xf32> to vector<8x32xf32>
    %14 = arith.mulf %12, %13 : vector<8x32xf32>
    %15 = arith.truncf %14 : vector<8x32xf32> to vector<8x32xbf16>
    %c0_6 = arith.constant 0 : index
    %c0_7 = arith.constant 0 : index
    %16 = vector.load %arg4[%c0_6, %c0_7] : memref<32x32xbf16, #tpu.memory_space<vmem>>, vector<32x32xbf16>
    %cst_8 = arith.constant dense<0.000000e+00> : vector<8x32xf32>
    %17 = tpu.matmul %15, %16, %cst_8 {dimension_numbers = #tpu.dot_dimension_numbers<[1], [0], [0], [1], [0, 0, 1, 1], [], []>} : vector<8x32xbf16>, vector<32x32xbf16>, vector<8x32xf32> -> vector<8x32xf32>
    %18 = arith.truncf %17 : vector<8x32xf32> to vector<8x32xbf16>
    %c0_9 = arith.constant 0 : index
    %c0_10 = arith.constant 0 : index
    %c0_11 = arith.constant 0 : index
    %19 = vector.load %arg7[%c0_9, %c0_10, %c0_11] : memref<1x8x32xbf16, #tpu.memory_space<vmem>>, vector<1x8x32xbf16>
    %20 = vector.shape_cast %19 : vector<1x8x32xbf16> to vector<8x32xbf16>
    %21 = vector.shape_cast %18 : vector<8x32xbf16> to vector<1x8x32xbf16>
    tpu.vector_store %arg7[%c0_9, %c0_10, %c0_11], %21 {strides = array<i32>} : memref<1x8x32xbf16, #tpu.memory_space<vmem>>, vector<1x8x32xbf16>,
    %c0_12 = arith.constant 0 : index
    %c0_13 = arith.constant 0 : index
    %22 = vector.load %arg5[%c0_12, %c0_13] : memref<32x32xbf16, #tpu.memory_space<vmem>>, vector<32x32xbf16>
    %cst_14 = arith.constant dense<0.000000e+00> : vector<8x32xf32>
    %23 = tpu.matmul %15, %22, %cst_14 {dimension_numbers = #tpu.dot_dimension_numbers<[1], [0], [0], [1], [0, 0, 1, 1], [], []>} : vector<8x32xbf16>, vector<32x32xbf16>, vector<8x32xf32> -> vector<8x32xf32>
    %24 = arith.truncf %23 : vector<8x32xf32> to vector<8x32xbf16>
    %c0_15 = arith.constant 0 : index
    %c0_16 = arith.constant 0 : index
    %c0_17 = arith.constant 0 : index
    %25 = vector.load %arg8[%c0_15, %c0_16, %c0_17] : memref<1x8x32xbf16, #tpu.memory_space<vmem>>, vector<1x8x32xbf16>
    %26 = vector.shape_cast %25 : vector<1x8x32xbf16> to vector<8x32xbf16>
    %27 = vector.shape_cast %24 : vector<8x32xbf16> to vector<1x8x32xbf16>
    tpu.vector_store %arg8[%c0_15, %c0_16, %c0_17], %27 {strides = array<i32>} : memref<1x8x32xbf16, #tpu.memory_space<vmem>>, vector<1x8x32xbf16>,
    %c0_18 = arith.constant 0 : index
    %c0_19 = arith.constant 0 : index
    %28 = vector.load %arg6[%c0_18, %c0_19] : memref<32x32xbf16, #tpu.memory_space<vmem>>, vector<32x32xbf16>
    %cst_20 = arith.constant dense<0.000000e+00> : vector<8x32xf32>
    %29 = tpu.matmul %15, %28, %cst_20 {dimension_numbers = #tpu.dot_dimension_numbers<[1], [0], [0], [1], [0, 0, 1, 1], [], []>} : vector<8x32xbf16>, vector<32x32xbf16>, vector<8x32xf32> -> vector<8x32xf32>
    %30 = arith.truncf %29 : vector<8x32xf32> to vector<8x32xbf16>
    %c0_21 = arith.constant 0 : index
    %c0_22 = arith.constant 0 : index
    %c0_23 = arith.constant 0 : index
    %31 = vector.load %arg9[%c0_21, %c0_22, %c0_23] : memref<1x8x32xbf16, #tpu.memory_space<vmem>>, vector<1x8x32xbf16>
    %32 = vector.shape_cast %31 : vector<1x8x32xbf16> to vector<8x32xbf16>
    %33 = vector.shape_cast %30 : vector<8x32xbf16> to vector<1x8x32xbf16>
    tpu.vector_store %arg9[%c0_21, %c0_22, %c0_23], %33 {strides = array<i32>} : memref<1x8x32xbf16, #tpu.memory_space<vmem>>, vector<1x8x32xbf16>,
    return
  }
  func.func @transform_0(%arg0: i32, %arg1: i32) -> (i32, i32, i32) {
    %c0_i32 = arith.constant 0 : i32
    %c0_i32_0 = arith.constant 0 : i32
    return %arg0, %arg1, %c0_i32 : i32, i32, i32
  }
  func.func @transform_1(%arg0: i32, %arg1: i32) -> (i32, i32) {
    %c0_i32 = arith.constant 0 : i32
    %c0_i32_0 = arith.constant 0 : i32
    %c0_i32_1 = arith.constant 0 : i32
    return %c0_i32, %c0_i32_0 : i32, i32
  }
  func.func @transform_2(%arg0: i32, %arg1: i32) -> (i32, i32) {
    %c0_i32 = arith.constant 0 : i32
    %c0_i32_0 = arith.constant 0 : i32
    %c0_i32_1 = arith.constant 0 : i32
    return %c0_i32, %c0_i32_0 : i32, i32
  }
  func.func @transform_3(%arg0: i32, %arg1: i32) -> (i32, i32) {
    %c0_i32 = arith.constant 0 : i32
    %c0_i32_0 = arith.constant 0 : i32
    %c0_i32_1 = arith.constant 0 : i32
    return %c0_i32, %c0_i32_0 : i32, i32
  }
  func.func @transform_4(%arg0: i32, %arg1: i32) -> (i32, i32) {
    %c0_i32 = arith.constant 0 : i32
    %c0_i32_0 = arith.constant 0 : i32
    %c0_i32_1 = arith.constant 0 : i32
    return %c0_i32, %c0_i32_0 : i32, i32
  }
  func.func @transform_5(%arg0: i32, %arg1: i32) -> (i32, i32, i32) {
    %c0_i32 = arith.constant 0 : i32
    %c0_i32_0 = arith.constant 0 : i32
    return %arg0, %arg1, %c0_i32 : i32, i32, i32
  }
  func.func @transform_6(%arg0: i32, %arg1: i32) -> (i32, i32, i32) {
    %c0_i32 = arith.constant 0 : i32
    %c0_i32_0 = arith.constant 0 : i32
    return %arg0, %arg1, %c0_i32 : i32, i32, i32
  }
  func.func @transform_7(%arg0: i32, %arg1: i32) -> (i32, i32, i32) {
    %c0_i32 = arith.constant 0 : i32
    %c0_i32_0 = arith.constant 0 : i32
    return %arg0, %arg1, %c0_i32 : i32, i32, i32
  }
}

</mosaic_0001>

<llo_original>
// kernel: tpu_custom_call.1
$region0: #{tpu_custom_call.1}
  #allocation0 [shape = 'u32[]', space=smem, size = 0x4, offset = 0x4, fixed_abs, tag = 'smem constant byte address 0x4 - core index']
  #allocation1 [shape = 'u32[144,128]{1,0:T(1,128)}', space=vmem, size = 0x12000, scoped, tag = 'internal scratch']
  %s0 = inlined_call_operand.hbm [shape: f32[2,8,32], index: 0, kind: input, shape index: {}]
  %s1 = inlined_call_operand.vmem [shape: f32[1,32], index: 1, kind: input, shape index: {}]
  %s2 = inlined_call_operand.hbm [shape: bf16[32,32], index: 2, kind: input, shape index: {}]
  %s3 = inlined_call_operand.hbm [shape: bf16[32,32], index: 3, kind: input, shape index: {}]
  %s4 = inlined_call_operand.hbm [shape: bf16[32,32], index: 4, kind: input, shape index: {}]
  %s5 = inlined_call_operand.hbm [shape: bf16[2,8,32], index: 5, kind: output, shape index: {0}]
  %s6 = inlined_call_operand.hbm [shape: bf16[2,8,32], index: 6, kind: output, shape index: {1}]
  %s7 = inlined_call_operand.hbm [shape: bf16[2,8,32], index: 7, kind: output, shape index: {2}]
  %8 = xla_tuple %s5, %s6, %s7
  %s9 = sld [smem:[#allocation0]]
  $region85: #{tpu_custom_call.1} parent=0
    _
  %s11 = ssub.s32 1, %s9
  %s12 = scalar_select 0, %s11, %s9
  $region1: #{tpu_custom_call.1} parent=0
    #allocation2 [shape = 'u8[8192]{0}', space=vmem, size = 0x2000, scoped, tag = 'input window, operand 0']
    #allocation3 [shape = 's32[2]{0}', space=sflag, size = 0x8, scoped, tag = 'scoped memory for tpu_custom_call.1']
    #allocation4 [shape = 's32[2]{0}', space=sflag, size = 0x8, scoped, tag = 'scoped memory for tpu_custom_call.1']
    #allocation5 [shape = 'u8[8192]{0}', space=vmem, size = 0x2000, scoped, tag = 'input window, operand 2, single buffered']
    #allocation6 [shape = 's32[1]{0}', space=sflag, size = 0x4, scoped, tag = 'scoped memory for tpu_custom_call.1']
    #allocation7 [shape = 'u8[8192]{0}', space=vmem, size = 0x2000, scoped, tag = 'input window, operand 3, single buffered']
    #allocation8 [shape = 'u8[8192]{0}', space=vmem, size = 0x2000, scoped, tag = 'input window, operand 4, single buffered']
    #allocation9 [shape = 's32[1]{0}', space=sflag, size = 0x4, scoped, tag = 'scoped memory for tpu_custom_call.1']
    #allocation10 [shape = 'u8[4096]{0}', space=vmem, size = 0x1000, scoped, tag = 'output window, operand 0']
    #allocation11 [shape = 'u8[4096]{0}', space=vmem, size = 0x1000, scoped, tag = 'output window, operand 1']
    #allocation12 [shape = 's32[2]{0}', space=sflag, size = 0x8, scoped, tag = 'scoped memory for tpu_custom_call.1']
    #allocation13 [shape = 'u8[4096]{0}', space=vmem, size = 0x1000, scoped, tag = 'output window, operand 2']
    %13 = vsyncpa [#allocation3], 0
    %s14 = scalar_lea.sflag [#allocation3], 1
    %15 = vsyncpa %s14, 0
    %16 = vsyncpa [#allocation6], 0
    %17 = vsyncpa [#allocation9], 0
    %18 = vsyncpa [#allocation4], 0
    %s19 = scalar_lea.sflag [#allocation4], 1
    %20 = vsyncpa %s19, 0
    %21 = vsyncpa [#allocation12], 0
    %s22 = scalar_lea.sflag [#allocation12], 1
    %23 = vsyncpa %s22, 0
    loop: start=0, step=1, limit=4
    $region2: #{tpu_custom_call.1} parent=1 // loop_pre_header
      _
    $region3: #{tpu_custom_call.1} parent=1 // loop_header
      %s25 = sphi 0, %s29
      %p26 = scmp.ge.s32.totalorder %s25, 4
      %s32 = sphi 0, %s44
      %s33 = sphi 0, %s40
      %s34 = sphi 0, %s32
      %s35 = sphi 0, %s33
      %s36 = sphi 0, %s34
      %s37 = sphi 0, %s35
      %s49 = sphi 0, %s51
      %s52 = sphi 0, %s49
      %s53 = sphi 0, %s52
      %s69 = sphi 0, %s53
      %s73 = sphi 0, %s73
      %s75 = sphi 0, %s73
      %s76 = sphi 0, %s75
      %s90 = sphi 0, %s76
      %s94 = sphi 0, %s94
      %s96 = sphi 0, %s94
      %s97 = sphi 0, %s96
      %s111 = sphi 0, %s97
      %s115 = sphi 0, %s115
      %s117 = sphi 0, %s115
      %s118 = sphi 0, %s117
      %s132 = sphi 0, %s118
      %s136 = sphi 0, %s136
      %s138 = sphi 0, %s136
      %s139 = sphi 0, %s138
      %s153 = sphi 0, %s139
      %s161 = sphi 0, %s163
      %s164 = sphi 0, %s161
      %s165 = sphi 0, %s164
      %s181 = sphi 0, %s165
      %s189 = sphi 0, %s191
      %s192 = sphi 0, %s189
      %s193 = sphi 0, %s192
      %s209 = sphi 0, %s193
      %s217 = sphi 0, %s219
      %s220 = sphi 0, %s217
      %s221 = sphi 0, %s220
      %s237 = sphi 0, %s221
    $region4: #{tpu_custom_call.1} parent=1 // loop_header_branch
      %28 = sbr.rel (%p26) target = $region8
    $region5: #{tpu_custom_call.1} parent=1 // loop_body
      %s30 = ssub.s32 %s25, 1
      %s31 = ssub.s32 %s25, 2
      %s38 = sadd.s32 1, %s33
      %p39 = scmp.ge.s32.totalorder %s38, 1
      %s40 = scalar_select %p39, 0, %s38
      %s41 = sadd.s32 1, %s32
      %s42 = scalar_select %p39, %s41, %s32
      %p43 = scmp.ge.s32.totalorder %s42, 2
      %s44 = scalar_select %p43, 0, %s42
      %s45 = ssub.s32 %s32, %s44
      %s46 = ssub.s32 %s33, %s40
      %s47 = sor.u32 %s45, %s46
      %p48 = scmp.eq.s32.totalorder %s47, 0
      %s50 = sadd.s32 %s49, 1
      %s51 = scalar_select %p48, %s49, %s50
      %p54 = pneg %p48
      %p55 = scmp.eq.s32.totalorder %s25, 1
      %p56 = por %p54, %p55
      %p57 = scmp.ne.s32.totalorder %s49, %s52
      %p58 = scmp.eq.s32.totalorder %s25, 0
      %p59 = por %p57, %p58
      %p60 = scmp.ne.s32.totalorder %s49, %s52
      %p61 = scmp.eq.s32.totalorder %s30, 1
      %p62 = por %p60, %p61
      %p63 = scmp.ne.s32.totalorder %s52, %s53
      %p64 = scmp.eq.s32.totalorder %s30, 0
      %p65 = por %p63, %p64
      %p66 = scmp.ne.s32.totalorder %s52, %s53
      %p67 = scmp.eq.s32.totalorder %s31, 1
      %p68 = por %p66, %p67
      %p70 = scmp.ne.s32.totalorder %s53, %s69
      %p71 = scmp.eq.s32.totalorder %s31, 0
      %p72 = por %p70, %p71
      %s74 = sadd.s32 %s73, 1
      %p77 = scmp.eq.s32.totalorder %s25, 1
      %p78 = scmp.ne.s32.totalorder %s73, %s75
      %p79 = scmp.eq.s32.totalorder %s25, 0
      %p80 = por %p78, %p79
      %p81 = scmp.ne.s32.totalorder %s73, %s75
      %p82 = scmp.eq.s32.totalorder %s30, 1
      %p83 = por %p81, %p82
      %p84 = scmp.ne.s32.totalorder %s75, %s76
      %p85 = scmp.eq.s32.totalorder %s30, 0
      %p86 = por %p84, %p85
      %p87 = scmp.ne.s32.totalorder %s75, %s76
      %p88 = scmp.eq.s32.totalorder %s31, 1
      %p89 = por %p87, %p88
      %p91 = scmp.ne.s32.totalorder %s76, %s90
      %p92 = scmp.eq.s32.totalorder %s31, 0
      %p93 = por %p91, %p92
      %s95 = sadd.s32 %s94, 1
      %p98 = scmp.eq.s32.totalorder %s25, 1
      %p99 = scmp.ne.s32.totalorder %s94, %s96
      %p100 = scmp.eq.s32.totalorder %s25, 0
      %p101 = por %p99, %p100
      %p102 = scmp.ne.s32.totalorder %s94, %s96
      %p103 = scmp.eq.s32.totalorder %s30, 1
      %p104 = por %p102, %p103
      %p105 = scmp.ne.s32.totalorder %s96, %s97
      %p106 = scmp.eq.s32.totalorder %s30, 0
      %p107 = por %p105, %p106
      %p108 = scmp.ne.s32.totalorder %s96, %s97
      %p109 = scmp.eq.s32.totalorder %s31, 1
      %p110 = por %p108, %p109
      %p112 = scmp.ne.s32.totalorder %s97, %s111
      %p113 = scmp.eq.s32.totalorder %s31, 0
      %p114 = por %p112, %p113
      %s116 = sadd.s32 %s115, 1
      %p119 = scmp.eq.s32.totalorder %s25, 1
      %p120 = scmp.ne.s32.totalorder %s115, %s117
      %p121 = scmp.eq.s32.totalorder %s25, 0
      %p122 = por %p120, %p121
      %p123 = scmp.ne.s32.totalorder %s115, %s117
      %p124 = scmp.eq.s32.totalorder %s30, 1
      %p125 = por %p123, %p124
      %p126 = scmp.ne.s32.totalorder %s117, %s118
      %p127 = scmp.eq.s32.totalorder %s30, 0
      %p128 = por %p126, %p127
      %p129 = scmp.ne.s32.totalorder %s117, %s118
      %p130 = scmp.eq.s32.totalorder %s31, 1
      %p131 = por %p129, %p130
      %p133 = scmp.ne.s32.totalorder %s118, %s132
      %p134 = scmp.eq.s32.totalorder %s31, 0
      %p135 = por %p133, %p134
      %s137 = sadd.s32 %s136, 1
      %p140 = scmp.eq.s32.totalorder %s25, 1
      %p141 = scmp.ne.s32.totalorder %s136, %s138
      %p142 = scmp.eq.s32.totalorder %s25, 0
      %p143 = por %p141, %p142
      %p144 = scmp.ne.s32.totalorder %s136, %s138
      %p145 = scmp.eq.s32.totalorder %s30, 1
      %p146 = por %p144, %p145
      %p147 = scmp.ne.s32.totalorder %s138, %s139
      %p148 = scmp.eq.s32.totalorder %s30, 0
      %p149 = por %p147, %p148
      %p150 = scmp.ne.s32.totalorder %s138, %s139
      %p151 = scmp.eq.s32.totalorder %s31, 1
      %p152 = por %p150, %p151
      %p154 = scmp.ne.s32.totalorder %s139, %s153
      %p155 = scmp.eq.s32.totalorder %s31, 0
      %p156 = por %p154, %p155
      %s157 = ssub.s32 %s32, %s44
      %s158 = ssub.s32 %s33, %s40
      %s159 = sor.u32 %s157, %s158
      %p160 = scmp.eq.s32.totalorder %s159, 0
      %s162 = sadd.s32 %s161, 1
      %s163 = scalar_select %p160, %s161, %s162
      %p166 = pneg %p160
      %p167 = scmp.eq.s32.totalorder %s25, 1
      %p168 = por %p166, %p167
      %p169 = scmp.ne.s32.totalorder %s161, %s164
      %p170 = scmp.eq.s32.totalorder %s25, 0
      %p171 = por %p169, %p170
      %p172 = scmp.ne.s32.totalorder %s161, %s164
      %p173 = scmp.eq.s32.totalorder %s30, 1
      %p174 = por %p172, %p173
      %p175 = scmp.ne.s32.totalorder %s164, %s165
      %p176 = scmp.eq.s32.totalorder %s30, 0
      %p177 = por %p175, %p176
      %p178 = scmp.ne.s32.totalorder %s164, %s165
      %p179 = scmp.eq.s32.totalorder %s31, 1
      %p180 = por %p178, %p179
      %p182 = scmp.ne.s32.totalorder %s165, %s181
      %p183 = scmp.eq.s32.totalorder %s31, 0
      %p184 = por %p182, %p183
      %s185 = ssub.s32 %s32, %s44
      %s186 = ssub.s32 %s33, %s40
      %s187 = sor.u32 %s185, %s186
      %p188 = scmp.eq.s32.totalorder %s187, 0
      %s190 = sadd.s32 %s189, 1
      %s191 = scalar_select %p188, %s189, %s190
      %p194 = pneg %p188
      %p195 = scmp.eq.s32.totalorder %s25, 1
      %p196 = por %p194, %p195
      %p197 = scmp.ne.s32.totalorder %s189, %s192
      %p198 = scmp.eq.s32.totalorder %s25, 0
      %p199 = por %p197, %p198
      %p200 = scmp.ne.s32.totalorder %s189, %s192
      %p201 = scmp.eq.s32.totalorder %s30, 1
      %p202 = por %p200, %p201
      %p203 = scmp.ne.s32.totalorder %s192, %s193
      %p204 = scmp.eq.s32.totalorder %s30, 0
      %p205 = por %p203, %p204
      %p206 = scmp.ne.s32.totalorder %s192, %s193
      %p207 = scmp.eq.s32.totalorder %s31, 1
      %p208 = por %p206, %p207
      %p210 = scmp.ne.s32.totalorder %s193, %s209
      %p211 = scmp.eq.s32.totalorder %s31, 0
      %p212 = por %p210, %p211
      %s213 = ssub.s32 %s32, %s44
      %s214 = ssub.s32 %s33, %s40
      %s215 = sor.u32 %s213, %s214
      %p216 = scmp.eq.s32.totalorder %s215, 0
      %s218 = sadd.s32 %s217, 1
      %s219 = scalar_select %p216, %s217, %s218
      %p222 = pneg %p216
      %p223 = scmp.eq.s32.totalorder %s25, 1
      %p224 = por %p222, %p223
      %p225 = scmp.ne.s32.totalorder %s217, %s220
      %p226 = scmp.eq.s32.totalorder %s25, 0
      %p227 = por %p225, %p226
      %p228 = scmp.ne.s32.totalorder %s217, %s220
      %p229 = scmp.eq.s32.totalorder %s30, 1
      %p230 = por %p228, %p229
      %p231 = scmp.ne.s32.totalorder %s220, %s221
      %p232 = scmp.eq.s32.totalorder %s30, 0
      %p233 = por %p231, %p232
      %p234 = scmp.ne.s32.totalorder %s220, %s221
      %p235 = scmp.eq.s32.totalorder %s31, 1
      %p236 = por %p234, %p235
      %p238 = scmp.ne.s32.totalorder %s221, %s237
      %p239 = scmp.eq.s32.totalorder %s31, 0
      %p240 = por %p238, %p239
      %p241 = scmp.le.s32.totalorder 1, %s25
      %p242 = scmp.lt.s32.totalorder %s25, 3
      %p243 = pnand %p241, %p242
      %p244 = pneg %p243
      // Predicated region
      $region9: #{tpu_custom_call.1} parent=5 // pred_check
        _
      $region10: #{tpu_custom_call.1} parent=5 // pred_check_branch
        %246 = sbr.rel (%p243) target = $region12
      $region11: #{tpu_custom_call.1} parent=5 // pred_region
        %s247 = ssub.s32 %s25, 1
        // Predicated region
        $region13: #{tpu_custom_call.1} parent=11 // pred_check
          %p248 = pneg %p86
        $region14: #{tpu_custom_call.1} parent=11 // pred_check_branch
          %250 = sbr.rel (%p248) target = $region16
        $region15: #{tpu_custom_call.1} parent=11 // pred_region
          _
        $region16: #{tpu_custom_call.1} parent=11 // pred_fallthru
          _
        // Predicated region
        $region17: #{tpu_custom_call.1} parent=11 // pred_check
          %p251 = pneg %p107
        $region18: #{tpu_custom_call.1} parent=11 // pred_check_branch
          %253 = sbr.rel (%p251) target = $region20
        $region19: #{tpu_custom_call.1} parent=11 // pred_region
          %s255 = ssub.s32 256, 256
          %256 = vsyncadd [#allocation6], %s255
          %s257 = sshll.u32 [#allocation5], 4
          %s258 = int_to_ptr.vmem [resolvable:$true] %s257
          %263 = dma.hbm_to_vmem [thread:$0]  %s2, 256, %s258, [#allocation6], 64, 64, 4
        $region20: #{tpu_custom_call.1} parent=11 // pred_fallthru
          _
        // Predicated region
        $region21: #{tpu_custom_call.1} parent=11 // pred_check
          %p264 = pneg %p128
        $region22: #{tpu_custom_call.1} parent=11 // pred_check_branch
          %266 = sbr.rel (%p264) target = $region24
        $region23: #{tpu_custom_call.1} parent=11 // pred_region
          %s268 = ssub.s32 256, 256
          %269 = vsyncadd [#allocation6], %s268
          %s270 = sshll.u32 [#allocation7], 4
          %s271 = int_to_ptr.vmem [resolvable:$true] %s270
          %276 = dma.hbm_to_vmem [thread:$0]  %s3, 256, %s271, [#allocation6], 64, 64, 4
        $region24: #{tpu_custom_call.1} parent=11 // pred_fallthru
          _
        // Predicated region
        $region25: #{tpu_custom_call.1} parent=11 // pred_check
          %p277 = pneg %p149
        $region26: #{tpu_custom_call.1} parent=11 // pred_check_branch
          %279 = sbr.rel (%p277) target = $region28
        $region27: #{tpu_custom_call.1} parent=11 // pred_region
          %s281 = ssub.s32 256, 256
          %282 = vsyncadd [#allocation9], %s281
          %s283 = sshll.u32 [#allocation8], 4
          %s284 = int_to_ptr.vmem [resolvable:$true] %s283
          %289 = dma.hbm_to_vmem [thread:$0]  %s4, 256, %s284, [#allocation9], 64, 64, 4
        $region28: #{tpu_custom_call.1} parent=11 // pred_fallthru
          _
      $region12: #{tpu_custom_call.1} parent=5 // pred_fallthru
        _
      %p290 = scmp.lt.s32.totalorder %s25, 2
      // Predicated region
      $region29: #{tpu_custom_call.1} parent=5 // pred_check
        %p291 = pneg %p290
      $region30: #{tpu_custom_call.1} parent=5 // pred_check_branch
        %293 = sbr.rel (%p291) target = $region32
      $region31: #{tpu_custom_call.1} parent=5 // pred_region
        // Predicated region
        $region33: #{tpu_custom_call.1} parent=31 // pred_check
          %p294 = pneg %p59
        $region34: #{tpu_custom_call.1} parent=31 // pred_check_branch
          %296 = sbr.rel (%p294) target = $region36
        $region35: #{tpu_custom_call.1} parent=31 // pred_region
          %s297 = sand.u32 %s49, 1
          %s298 = scalar_lea.sflag [#allocation3], %s297
          %s299 = sand.u32 %s49, 1
          %s300 = smul.addr %s299, 8
          %s301 = scalar_lea.vmem [#allocation2], %s300
          %s303 = ssub.s32 128, 128
          %304 = vsyncadd %s298, %s303
          %s305 = sadd.s32 %s33, %s32
          %s306 = smul.addr %s305, 128
          %s307 = scalar_lea.hbm %s0, %s306
          %s309 = sshll.u32 %s301, 4
          %s310 = int_to_ptr.vmem [resolvable:$true] %s309
          %312 = dma.hbm_to_vmem [thread:$0]  %s307, 128, %s310, %s298
        $region36: #{tpu_custom_call.1} parent=31 // pred_fallthru
          _
      $region32: #{tpu_custom_call.1} parent=5 // pred_fallthru
        _
      %p313 = scmp.le.s32.totalorder 1, %s25
      %p314 = scmp.lt.s32.totalorder %s25, 3
      %p315 = pnand %p313, %p314
      %p316 = pneg %p315
      // Predicated region
      $region37: #{tpu_custom_call.1} parent=5 // pred_check
        _
      $region38: #{tpu_custom_call.1} parent=5 // pred_check_branch
        %318 = sbr.rel (%p315) target = $region40
      $region39: #{tpu_custom_call.1} parent=5 // pred_region
        %s319 = ssub.s32 %s25, 1
        %s320 = sand.u32 %s52, 1
        %s321 = scalar_lea.sflag [#allocation3], %s320
        %s322 = sand.u32 %s52, 1
        %s323 = smul.addr %s322, 8
        %s324 = scalar_lea.vmem [#allocation2], %s323
        // Predicated region
        $region41: #{tpu_custom_call.1} parent=39 // pred_check
          %p325 = pneg %p65
        $region42: #{tpu_custom_call.1} parent=39 // pred_check_branch
          %327 = sbr.rel (%p325) target = $region44
        $region43: #{tpu_custom_call.1} parent=39 // pred_region
          %328 = dma.done %s321, 128
        $region44: #{tpu_custom_call.1} parent=39 // pred_fallthru
          _
        // Predicated region
        $region45: #{tpu_custom_call.1} parent=39 // pred_check
          %p329 = pneg %p107
        $region46: #{tpu_custom_call.1} parent=39 // pred_check_branch
          %331 = sbr.rel (%p329) target = $region48
        $region47: #{tpu_custom_call.1} parent=39 // pred_region
          %332 = dma.done [#allocation6], 256
        $region48: #{tpu_custom_call.1} parent=39 // pred_fallthru
          _
        // Predicated region
        $region49: #{tpu_custom_call.1} parent=39 // pred_check
          %p333 = pneg %p128
        $region50: #{tpu_custom_call.1} parent=39 // pred_check_branch
          %335 = sbr.rel (%p333) target = $region52
        $region51: #{tpu_custom_call.1} parent=39 // pred_region
          %336 = dma.done [#allocation6], 256
        $region52: #{tpu_custom_call.1} parent=39 // pred_fallthru
          _
        // Predicated region
        $region53: #{tpu_custom_call.1} parent=39 // pred_check
          %p337 = pneg %p149
        $region54: #{tpu_custom_call.1} parent=39 // pred_check_branch
          %339 = sbr.rel (%p337) target = $region56
        $region55: #{tpu_custom_call.1} parent=39 // pred_region
          %340 = dma.done [#allocation9], 256
        $region56: #{tpu_custom_call.1} parent=39 // pred_fallthru
          _
        %s341 = sand.u32 %s52, 1
        %s342 = scalar_lea.sflag [#allocation3], %s341
        %s343 = sand.u32 %s52, 1
        %s344 = smul.addr %s343, 8
        %s345 = scalar_lea.vmem [#allocation2], %s344
        %p346 = pneg %p65
        %p347 = pneg %p62
        %p348 = pneg %p86
        %p349 = pneg %p83
        %p350 = pneg %p107
        %p351 = pneg %p104
        %p352 = pneg %p128
        %p353 = pneg %p125
        %p354 = pneg %p149
        %p355 = pneg %p146
        %p356 = pneg %p177
        %p357 = pneg %p174
        %s358 = sand.u32 %s164, 1
        %s359 = scalar_lea.sflag [#allocation4], %s358
        %s360 = sand.u32 %s164, 1
        %s361 = smul.addr %s360, 4
        %s362 = scalar_lea.vmem [#allocation10], %s361
        %p363 = pneg %p205
        %p364 = pneg %p202
        %s365 = sand.u32 %s30, 1
        %s366 = scalar_lea.sflag [#allocation12], %s365
        %s367 = sand.u32 %s192, 1
        %s368 = smul.addr %s367, 4
        %s369 = scalar_lea.vmem [#allocation11], %s368
        %p370 = pneg %p233
        %p371 = pneg %p230
        %s372 = sand.u32 %s30, 1
        %s373 = scalar_lea.sflag [#allocation12], %s372
        %s374 = sand.u32 %s220, 1
        %s375 = smul.addr %s374, 4
        %s376 = scalar_lea.vmem [#allocation13], %s375
        %v378 = vld [vmem:[%s324] sm:$0xff]
        %v379 = vld [vmem:[%s1] sm:$0x1]
        %v380 = vmul.f32 %v378, %v378
        %vm381 = vcmask 261120
        %v382 = vsel %vm381, %v380, 0.0
        %383 = vadd.xlane.f32.xlu0 %v382
        %v384 = vpop.xlane.xlu0 %383
        %v385 = vrcp.pop 32.0
        %v386 = vmul.f32 %v384, %v385
        %v387 = vadd.f32 %v386, 1e-05
        %v388 = vrsqrt.pop %v387
        %v389 = vmul.f32 %v378, %v388
        %v391 = vlaneseq
        %v392 = vshrl.u32 %v391, 7
        %v393 = vsub.s32 0, %v392
        %v394 = vrot.slane %v379, %v393
        %v396 = vmul.f32 %v389, %v394
        %v397 = vpack.c.bf16 %v396, %v396
        %v398 = vld [vmem:[#allocation5] sm:$0xf]
        %v399 = vld [vmem:[#allocation5 + $0x4] sm:$0xf]
        %v400 = vld [vmem:[#allocation5 + $0x8] sm:$0xf]
        %v401 = vld [vmem:[#allocation5 + $0xc] sm:$0xf]
        %v406 = vunpack.c.l.b16 %v398
        %v407 = vunpack.c.l.b16 %v399
        %v408 = vunpack.c.l.b16 %v400
        %v409 = vunpack.c.l.b16 %v401
        %v410 = vpack.c.b16 %v407, %v406
        %v411 = vpack.c.b16 %v409, %v408
        %v415 = vsel %vm381, %v397, 0
        %417 = vmatprep.subr.bf16.mxu0 0
        %418 = vmatpush1.bf16.msra.mxu0 %v410
        %419 = vmatprep.subr.bf16.mxu0 0
        %420 = vmatpush1.bf16.msra.mxu0 %v411
        %421 = vmatprep.subr.bf16.mxu0 0
        %422 = vmatpush1.bf16.msra.mxu0 0
        %423 = vmatprep.subr.bf16.mxu0 0
        %424 = vmatpush1.bf16.msra.mxu0 0
        %425 = vmatprep.subr.bf16.mxu0 0
        %426 = vmatpush1.bf16.msra.mxu0 0
        %427 = vmatprep.subr.bf16.mxu0 0
        %428 = vmatpush1.bf16.msra.mxu0 0
        %429 = vmatprep.subr.bf16.mxu0 0
        %430 = vmatpush1.bf16.msra.mxu0 0
        %431 = vmatprep.subr.bf16.mxu0 0
        %432 = vmatpush1.bf16.msra.mxu0 0
        %433 = vmatprep.subr.bf16.mxu0 0
        %434 = vmatpush1.bf16.msra.mxu0 0
        %435 = vmatprep.subr.bf16.mxu0 0
        %436 = vmatpush1.bf16.msra.mxu0 0
        %437 = vmatprep.subr.bf16.mxu0 0
        %438 = vmatpush1.bf16.msra.mxu0 0
        %439 = vmatprep.subr.bf16.mxu0 0
        %440 = vmatpush1.bf16.msra.mxu0 0
        %441 = vmatprep.subr.bf16.mxu0 0
        %442 = vmatpush1.bf16.msra.mxu0 0
        %443 = vmatprep.subr.bf16.mxu0 0
        %444 = vmatpush1.bf16.msra.mxu0 0
        %445 = vmatprep.subr.bf16.mxu0 0
        %446 = vmatpush1.bf16.msra.mxu0 0
        %447 = vmatprep.subr.bf16.mxu0 0
        %448 = vmatpush1.bf16.msra.mxu0 0
        %449 = vmatprep.mubr.bf16.mxu0 0
        %450 = vmatmul.mubr.bf16.gmra.mrb[0].mxu0 %v415
        %v451 = vpop.f32.mrb[0].mxu0
        %v452 = vadd.f32 0.0, %v451
        %v453 = vpop.f32.mrb[0].mxu0
        %v454 = vpop.f32.mrb[0].mxu0
        %v455 = vpop.f32.mrb[0].mxu0
        %456 = vdwg.mxu0
        %v457 = vpack.c.bf16 %v452, %v452
        %vm458 = vcmask 257024
        %459 = vst.msk [vmem:[%s362] sm:$0xf] %vm458, %v457
        %v460 = vld [vmem:[#allocation7] sm:$0xf]
        %v461 = vld [vmem:[#allocation7 + $0x4] sm:$0xf]
        %v462 = vld [vmem:[#allocation7 + $0x8] sm:$0xf]
        %v463 = vld [vmem:[#allocation7 + $0xc] sm:$0xf]
        %v468 = vunpack.c.l.b16 %v460
        %v469 = vunpack.c.l.b16 %v461
        %v470 = vunpack.c.l.b16 %v462
        %v471 = vunpack.c.l.b16 %v463
        %v472 = vpack.c.b16 %v469, %v468
        %v473 = vpack.c.b16 %v471, %v470
        %476 = vmatprep.subr.bf16.mxu0 0
        %477 = vmatpush1.bf16.msra.mxu0 %v472
        %478 = vmatprep.subr.bf16.mxu0 0
        %479 = vmatpush1.bf16.msra.mxu0 %v473
        %480 = vmatprep.subr.bf16.mxu0 0
        %481 = vmatpush1.bf16.msra.mxu0 0
        %482 = vmatprep.subr.bf16.mxu0 0
        %483 = vmatpush1.bf16.msra.mxu0 0
        %484 = vmatprep.subr.bf16.mxu0 0
        %485 = vmatpush1.bf16.msra.mxu0 0
        %486 = vmatprep.subr.bf16.mxu0 0
        %487 = vmatpush1.bf16.msra.mxu0 0
        %488 = vmatprep.subr.bf16.mxu0 0
        %489 = vmatpush1.bf16.msra.mxu0 0
        %490 = vmatprep.subr.bf16.mxu0 0
        %491 = vmatpush1.bf16.msra.mxu0 0
        %492 = vmatprep.subr.bf16.mxu0 0
        %493 = vmatpush1.bf16.msra.mxu0 0
        %494 = vmatprep.subr.bf16.mxu0 0
        %495 = vmatpush1.bf16.msra.mxu0 0
        %496 = vmatprep.subr.bf16.mxu0 0
        %497 = vmatpush1.bf16.msra.mxu0 0
        %498 = vmatprep.subr.bf16.mxu0 0
        %499 = vmatpush1.bf16.msra.mxu0 0
        %500 = vmatprep.subr.bf16.mxu0 0
        %501 = vmatpush1.bf16.msra.mxu0 0
        %502 = vmatprep.subr.bf16.mxu0 0
        %503 = vmatpush1.bf16.msra.mxu0 0
        %504 = vmatprep.subr.bf16.mxu0 0
        %505 = vmatpush1.bf16.msra.mxu0 0
        %506 = vmatprep.subr.bf16.mxu0 0
        %507 = vmatpush1.bf16.msra.mxu0 0
        %508 = vmatprep.mubr.bf16.mxu0 0
        %509 = vmatmul.mubr.bf16.gmra.mrb[0].mxu0 %v415
        %v510 = vpop.f32.mrb[0].mxu0
        %v511 = vadd.f32 0.0, %v510
        %v512 = vpop.f32.mrb[0].mxu0
        %v513 = vpop.f32.mrb[0].mxu0
        %v514 = vpop.f32.mrb[0].mxu0
        %515 = vdwg.mxu0
        %v516 = vpack.c.bf16 %v511, %v511
        %517 = vst.msk [vmem:[%s369] sm:$0xf] %vm458, %v516
        %v518 = vld [vmem:[#allocation8] sm:$0xf]
        %v519 = vld [vmem:[#allocation8 + $0x4] sm:$0xf]
        %v520 = vld [vmem:[#allocation8 + $0x8] sm:$0xf]
        %v521 = vld [vmem:[#allocation8 + $0xc] sm:$0xf]
        %v526 = vunpack.c.l.b16 %v518
        %v527 = vunpack.c.l.b16 %v519
        %v528 = vunpack.c.l.b16 %v520
        %v529 = vunpack.c.l.b16 %v521
        %v530 = vpack.c.b16 %v527, %v526
        %v531 = vpack.c.b16 %v529, %v528
        %534 = vmatprep.subr.bf16.mxu0 0
        %535 = vmatpush1.bf16.msra.mxu0 %v530
        %536 = vmatprep.subr.bf16.mxu0 0
        %537 = vmatpush1.bf16.msra.mxu0 %v531
        %538 = vmatprep.subr.bf16.mxu0 0
        %539 = vmatpush1.bf16.msra.mxu0 0
        %540 = vmatprep.subr.bf16.mxu0 0
        %541 = vmatpush1.bf16.msra.mxu0 0
        %542 = vmatprep.subr.bf16.mxu0 0
        %543 = vmatpush1.bf16.msra.mxu0 0
        %544 = vmatprep.subr.bf16.mxu0 0
        %545 = vmatpush1.bf16.msra.mxu0 0
        %546 = vmatprep.subr.bf16.mxu0 0
        %547 = vmatpush1.bf16.msra.mxu0 0
        %548 = vmatprep.subr.bf16.mxu0 0
        %549 = vmatpush1.bf16.msra.mxu0 0
        %550 = vmatprep.subr.bf16.mxu0 0
        %551 = vmatpush1.bf16.msra.mxu0 0
        %552 = vmatprep.subr.bf16.mxu0 0
        %553 = vmatpush1.bf16.msra.mxu0 0
        %554 = vmatprep.subr.bf16.mxu0 0
        %555 = vmatpush1.bf16.msra.mxu0 0
        %556 = vmatprep.subr.bf16.mxu0 0
        %557 = vmatpush1.bf16.msra.mxu0 0
        %558 = vmatprep.subr.bf16.mxu0 0
        %559 = vmatpush1.bf16.msra.mxu0 0
        %560 = vmatprep.subr.bf16.mxu0 0
        %561 = vmatpush1.bf16.msra.mxu0 0
        %562 = vmatprep.subr.bf16.mxu0 0
        %563 = vmatpush1.bf16.msra.mxu0 0
        %564 = vmatprep.subr.bf16.mxu0 0
        %565 = vmatpush1.bf16.msra.mxu0 0
        %566 = vmatprep.mubr.bf16.mxu0 0
        %567 = vmatmul.mubr.bf16.gmra.mrb[0].mxu0 %v415
        %v568 = vpop.f32.mrb[0].mxu0
        %v569 = vadd.f32 0.0, %v568
        %v570 = vpop.f32.mrb[0].mxu0
        %v571 = vpop.f32.mrb[0].mxu0
        %v572 = vpop.f32.mrb[0].mxu0
        %573 = vdwg.mxu0
        %v574 = vpack.c.bf16 %v569, %v569
        %575 = vst.msk [vmem:[%s376] sm:$0xf] %vm458, %v574
        %s576 = sand.u32 %s164, 1
        %s577 = scalar_lea.sflag [#allocation4], %s576
        %s578 = sand.u32 %s164, 1
        %s579 = smul.addr %s578, 4
        %s580 = scalar_lea.vmem [#allocation10], %s579
        %s581 = sand.u32 %s30, 1
        %s582 = scalar_lea.sflag [#allocation12], %s581
        %s583 = sand.u32 %s192, 1
        %s584 = smul.addr %s583, 4
        %s585 = scalar_lea.vmem [#allocation11], %s584
        %s586 = sand.u32 %s30, 1
        %s587 = scalar_lea.sflag [#allocation12], %s586
        %s588 = sand.u32 %s220, 1
        %s589 = smul.addr %s588, 4
        %s590 = scalar_lea.vmem [#allocation13], %s589
        // Predicated region
        $region57: #{tpu_custom_call.1} parent=39 // pred_check
          %p591 = pneg %p174
        $region58: #{tpu_custom_call.1} parent=39 // pred_check_branch
          %593 = sbr.rel (%p591) target = $region60
        $region59: #{tpu_custom_call.1} parent=39 // pred_region
          %s595 = ssub.s32 64, 64
          %596 = vsyncadd %s577, %s595
          %s597 = sadd.s32 %s35, %s34
          %s598 = smul.addr %s597, 64
          %s599 = scalar_lea.hbm %s5, %s598
          %s601 = sshll.u32 %s580, 4
          %s602 = int_to_ptr.vmem [resolvable:$true] %s601
          %604 = dma.vmem_to_hbm [thread:$0]  %s602, 64, %s599, %s577
        $region60: #{tpu_custom_call.1} parent=39 // pred_fallthru
          _
        // Predicated region
        $region61: #{tpu_custom_call.1} parent=39 // pred_check
          %p605 = pneg %p202
        $region62: #{tpu_custom_call.1} parent=39 // pred_check_branch
          %607 = sbr.rel (%p605) target = $region64
        $region63: #{tpu_custom_call.1} parent=39 // pred_region
          %s609 = ssub.s32 64, 64
          %610 = vsyncadd %s582, %s609
          %s611 = sadd.s32 %s35, %s34
          %s612 = smul.addr %s611, 64
          %s613 = scalar_lea.hbm %s6, %s612
          %s615 = sshll.u32 %s585, 4
          %s616 = int_to_ptr.vmem [resolvable:$true] %s615
          %618 = dma.vmem_to_hbm [thread:$0]  %s616, 64, %s613, %s582
        $region64: #{tpu_custom_call.1} parent=39 // pred_fallthru
          _
        // Predicated region
        $region65: #{tpu_custom_call.1} parent=39 // pred_check
          %p619 = pneg %p230
        $region66: #{tpu_custom_call.1} parent=39 // pred_check_branch
          %621 = sbr.rel (%p619) target = $region68
        $region67: #{tpu_custom_call.1} parent=39 // pred_region
          %s623 = ssub.s32 64, 64
          %624 = vsyncadd %s587, %s623
          %s625 = sadd.s32 %s35, %s34
          %s626 = smul.addr %s625, 64
          %s627 = scalar_lea.hbm %s7, %s626
          %s629 = sshll.u32 %s590, 4
          %s630 = int_to_ptr.vmem [resolvable:$true] %s629
          %632 = dma.vmem_to_hbm [thread:$0]  %s630, 64, %s627, %s587
        $region68: #{tpu_custom_call.1} parent=39 // pred_fallthru
          _
      $region40: #{tpu_custom_call.1} parent=5 // pred_fallthru
        _
      %p633 = scmp.le.s32.totalorder 2, %s25
      // Predicated region
      $region69: #{tpu_custom_call.1} parent=5 // pred_check
        %p634 = pneg %p633
      $region70: #{tpu_custom_call.1} parent=5 // pred_check_branch
        %636 = sbr.rel (%p634) target = $region72
      $region71: #{tpu_custom_call.1} parent=5 // pred_region
        %s637 = ssub.s32 %s25, 2
        // Predicated region
        $region73: #{tpu_custom_call.1} parent=71 // pred_check
          %p638 = pneg %p180
        $region74: #{tpu_custom_call.1} parent=71 // pred_check_branch
          %640 = sbr.rel (%p638) target = $region76
        $region75: #{tpu_custom_call.1} parent=71 // pred_region
          %s641 = sand.u32 %s165, 1
          %s642 = scalar_lea.sflag [#allocation4], %s641
          %s643 = sand.u32 %s165, 1
          %s644 = smul.addr %s643, 4
          %s645 = scalar_lea.vmem [#allocation10], %s644
          %646 = dma.done %s642, 64
        $region76: #{tpu_custom_call.1} parent=71 // pred_fallthru
          _
        // Predicated region
        $region77: #{tpu_custom_call.1} parent=71 // pred_check
          %p647 = pneg %p208
        $region78: #{tpu_custom_call.1} parent=71 // pred_check_branch
          %649 = sbr.rel (%p647) target = $region80
        $region79: #{tpu_custom_call.1} parent=71 // pred_region
          %s650 = sand.u32 %s31, 1
          %s651 = scalar_lea.sflag [#allocation12], %s650
          %s652 = sand.u32 %s193, 1
          %s653 = smul.addr %s652, 4
          %s654 = scalar_lea.vmem [#allocation11], %s653
          %655 = dma.done %s651, 64
        $region80: #{tpu_custom_call.1} parent=71 // pred_fallthru
          _
        // Predicated region
        $region81: #{tpu_custom_call.1} parent=71 // pred_check
          %p656 = pneg %p236
        $region82: #{tpu_custom_call.1} parent=71 // pred_check_branch
          %658 = sbr.rel (%p656) target = $region84
        $region83: #{tpu_custom_call.1} parent=71 // pred_region
          %s659 = sand.u32 %s31, 1
          %s660 = scalar_lea.sflag [#allocation12], %s659
          %s661 = sand.u32 %s221, 1
          %s662 = smul.addr %s661, 4
          %s663 = scalar_lea.vmem [#allocation13], %s662
          %664 = dma.done %s660, 64
        $region84: #{tpu_custom_call.1} parent=71 // pred_fallthru
          _
      $region72: #{tpu_custom_call.1} parent=5 // pred_fallthru
        _
    $region6: #{tpu_custom_call.1} parent=1 // loop_footer
      %s29 = sadd.s32 1, %s25
    $region7: #{tpu_custom_call.1} parent=1 // loop_footer_branch
      %24 = sbr.rel target = $region3
    $region8: #{tpu_custom_call.1} parent=1 // loop_exit
      _
    %665 = vsyncpa [#allocation3], 1
    %s666 = scalar_lea.sflag [#allocation3], 1
    %667 = vsyncpa %s666, 1
    %668 = vsyncpa [#allocation6], 1
    %669 = vsyncpa [#allocation9], 1
    %670 = vsyncpa [#allocation4], 1
    %s671 = scalar_lea.sflag [#allocation4], 1
    %672 = vsyncpa %s671, 1
    %673 = vsyncpa [#allocation12], 1
    %s674 = scalar_lea.sflag [#allocation12], 1
    %675 = vsyncpa %s674, 1

</llo_original>
